<compile_context>
chip_gen: v7x
topology: tpu7x:2x2x1
jax: 0.10.0
libtpu: 0.0.40
codegen_flags: <defaults>
</compile_context>

<pallas_src>
import jax
import jax.numpy as jnp
from jax.experimental import pallas as pl
from jax.experimental.pallas import tpu as pltpu

GRID = 13
S = GRID * GRID          # 169 grid cells (hardcoded to 13, like the reference)
A = 5                    # anchor boxes (hardcoded to 5, like the reference)
LAMBDA_CLASS = 1.0


def _yolo_class_loss_kernel(conf_t_ref, cls_t_ref, cls_p_ref, out_ref):
    # Cast after the DMA (VPU upcast is free filler under the DMA); the
    # wrapper never materializes f32 copies in HBM.
    conf_t = conf_t_ref[...].astype(jnp.float32)        # (TB, S*A)
    cls_t = cls_t_ref[...].astype(jnp.float32)          # (TB, S*A*C)
    cls_p = cls_p_ref[...].astype(jnp.float32)          # (TB, S*A*C)

    n_l = jnp.sum(conf_t, axis=-1, keepdims=True)                       # (TB, 1)
    cls_sum = jnp.sum(cls_t * jnp.log(cls_p), axis=-1, keepdims=True)   # (TB, 1)

    # NOTE: like the reference, no guard for n_l == 0 (would yield inf/nan).
    out_ref[...] = (LAMBDA_CLASS * cls_sum) * pl.reciprocal(n_l, approx=False)


def _vmem_capacity_bytes():
    """Physical VMEM of the attached TPU; conservative 64 MiB (v7x) fallback."""
    try:
        info = pltpu.get_tpu_info()
    except Exception:
        return 64 << 20
    for name in ("vmem_capacity_bytes", "vmem_size_bytes", "vmem_bytes"):
        v = getattr(info, name, None)
        if isinstance(v, int) and v > 0:
            return v
    return 64 << 20


def _select_tile_rows(B, SA, SAC, conf_isize, cls_t_isize, cls_p_isize):
    """Pick batch-rows-per-step and a matching scoped-VMEM limit."""
    bytes_per_row = SA * conf_isize + SAC * (cls_t_isize + cls_p_isize)
    min_isize = max(min(conf_isize, cls_t_isize, cls_p_isize), 1)
    sub = 8 * max(1, 4 // min_isize)          # 8 for f32, 16 for bf16, 32 for int8/fp8

    vmem_phys = _vmem_capacity_bytes()
    budget = vmem_phys // 2                    # double-buffered input blocks live here
    max_rows = max(budget // (2 * bytes_per_row), 1)

    if B <= sub:
        tb = B                                 # one step; block equals the full batch dim
    else:
        # >= 2 grid steps (v7x: lets the "parallel" batch axis use both TCs),
        # sublane-aligned, and within the VMEM budget.
        tb = min(max_rows, -(-B // 2))         # ceil(B/2)
        tb = max((tb // sub) * sub, sub)

    working = 2 * tb * bytes_per_row           # 2 pipeline buffers per input
    vmem_limit = max(32 << 20, working + (16 << 20))
    vmem_limit = min(vmem_limit, vmem_phys - (8 << 20))
    return int(tb), int(vmem_limit)


def yolov2_loss(xywh_truth, xywh_pred, conf_truth, conf_pred,
                class_truth, class_pred, anchors_w=None, anchors_h=None):
    """Mirrors YOLOv2Loss.forward: returns mean(loss_class) over the batch.

    xywh_truth / xywh_pred / conf_pred / anchors are accepted for interface
    parity with the PyTorch module but do not influence its return value
    (loss_xywh and loss_conf are discarded in the reference), so they are
    never DMA'd nor computed on.
    """
    del xywh_truth, xywh_pred, conf_pred, anchors_w, anchors_h  # dead in forward

    B = conf_truth.shape[0]
    SA = conf_truth.shape[1] * conf_truth.shape[2]          # S * A
    SAC = SA * class_truth.shape[-1]                        # S * A * C

    # Contiguous flattening only (no transposes, no dtype casts) -> lane-dense
    # last axes; the DMA streams full rows.
    conf_t = conf_truth.reshape(B, SA)
    cls_t = class_truth.reshape(B, SAC)
    cls_p = class_pred.reshape(B, SAC)

    TB, vmem_limit = _select_tile_rows(
        B, SA, SAC,
        conf_t.dtype.itemsize, cls_t.dtype.itemsize, cls_p.dtype.itemsize)

    # Note (v7x, degenerate tiny-B case): when B fits in one sublane group the
    # grid collapses to a single step; splitting the S*A*C reduction across the
    # two TensorCores is not worth it at that data volume, so it is omitted.
    per_batch = pl.pallas_call(
        _yolo_class_loss_kernel,
        out_shape=jax.ShapeDtypeStruct((B, 1), jnp.float32),
        grid=(pl.cdiv(B, TB),),
        in_specs=[
            pl.BlockSpec((TB, SA), lambda i: (i, 0)),    # conf_truth  (for N_l)
            pl.BlockSpec((TB, SAC), lambda i: (i, 0)),   # class_truth
            pl.BlockSpec((TB, SAC), lambda i: (i, 0)),   # class_pred
        ],
        out_specs=pl.BlockSpec((TB, 1), lambda i: (i, 0)),
        compiler_params=pltpu.CompilerParams(
            dimension_semantics=("parallel",),           # batch axis sharded on v7x
            vmem_limit_bytes=vmem_limit),
    )(conf_t, cls_t, cls_p)

    # The module's forward returns torch.mean(loss_class) only.
    return jnp.mean(per_batch[:, 0])


if __name__ == "__main__":
    key = jax.random.PRNGKey(0)
    B, C = 2, 4
    k = jax.random.split(key, 6)

    xywh_truth = jax.random.normal(k[0], (B, S, A, 4), jnp.float32) * 0.1
    xywh_pred = jax.random.normal(k[1], (B, S, A, 4), jnp.float32) * 0.1
    conf_truth = (jax.random.uniform(k[2], (B, S, A)) < 0.1).astype(jnp.float32)
    conf_pred = jax.random.uniform(k[3], (B, S, A), jnp.float32)
    class_truth = jax.random.uniform(k[4], (B, S, A, C), jnp.float32)
    class_pred = jax.random.uniform(k[5], (B, S, A, C), jnp.float32,
                                    minval=0.05, maxval=0.95)
    # Deterministic synthetic anchor boxes (converter.anchor_boxes stand-in);
    # they do not affect the module's return value.
    anchors_w = jnp.array([0.10, 0.20, 0.30, 0.40, 0.50], jnp.float32)
    anchors_h = jnp.array([0.15, 0.25, 0.35, 0.30, 0.20], jnp.float32)

    loss = yolov2_loss(xywh_truth, xywh_pred, conf_truth, conf_pred,
                       class_truth, class_pred, anchors_w, anchors_h)
    loss = jax.block_until_ready(loss)

    # pure-JAX reference for the module's returned value (mean class loss)
    n_l = conf_truth.sum((1, 2))
    ref = jnp.mean(LAMBDA_CLASS / n_l *
                   (class_truth * jnp.log(class_pred)).sum((1, 2, 3)))
    assert bool(jnp.isfinite(loss)), f"non-finite loss: {loss}"
    assert bool(jnp.allclose(loss, ref, rtol=1e-3, atol=1e-3)), (loss, ref)
    print("KERNEL_OK")
</pallas_src>

<mosaic_0001>
module attributes {stable_mosaic.version = 11 : i64} {
  func.func @_yolo_class_loss_kernel(%arg0: i32, %arg1: memref<2x845xf32, #tpu.memory_space<vmem>>, %arg2: memref<2x3380xf32, #tpu.memory_space<vmem>>, %arg3: memref<2x3380xf32, #tpu.memory_space<vmem>>, %arg4: memref<2x1xf32, #tpu.memory_space<vmem>>) attributes {dimension_semantics = [#tpu.dimension_semantics<parallel>], iteration_bounds = array<i64: 1>, scalar_prefetch = 0 : i64, scratch_operands = 0 : i64, tpu.core_type = #tpu.core_type<tc>, window_params = [{transform_indices = @transform_0, window_bounds = array<i64: 2, 845>}, {transform_indices = @transform_1, window_bounds = array<i64: 2, 3380>}, {transform_indices = @transform_2, window_bounds = array<i64: 2, 3380>}, {transform_indices = @transform_3, window_bounds = array<i64: 2, 1>}]} {
    %c0 = arith.constant 0 : index
    %c0_0 = arith.constant 0 : index
    %0 = vector.load %arg1[%c0, %c0_0] : memref<2x845xf32, #tpu.memory_space<vmem>>, vector<2x845xf32>
    %c0_1 = arith.constant 0 : index
    %c0_2 = arith.constant 0 : index
    %1 = vector.load %arg2[%c0_1, %c0_2] : memref<2x3380xf32, #tpu.memory_space<vmem>>, vector<2x3380xf32>
    %c0_3 = arith.constant 0 : index
    %c0_4 = arith.constant 0 : index
    %2 = vector.load %arg3[%c0_3, %c0_4] : memref<2x3380xf32, #tpu.memory_space<vmem>>, vector<2x3380xf32>
    %cst = arith.constant dense<0.000000e+00> : vector<2xf32>
    %3 = vector.multi_reduction <add>, %0, %cst [1] : vector<2x845xf32> to vector<2xf32>
    %4 = vector.shape_cast %3 : vector<2xf32> to vector<2x1xf32>
    %5 = math.log %2 : vector<2x3380xf32>
    %6 = arith.mulf %1, %5 : vector<2x3380xf32>
    %cst_5 = arith.constant dense<0.000000e+00> : vector<2xf32>
    %7 = vector.multi_reduction <add>, %6, %cst_5 [1] : vector<2x3380xf32> to vector<2xf32>
    %8 = vector.shape_cast %7 : vector<2xf32> to vector<2x1xf32>
    %cst_6 = arith.constant 1.000000e+00 : f32
    %9 = vector.broadcast %cst_6 : f32 to vector<2x1xf32>
    %10 = arith.mulf %9, %8 : vector<2x1xf32>
    %11 = tpu.reciprocal %4 : vector<2x1xf32> -> vector<2x1xf32>
    %12 = arith.mulf %10, %11 : vector<2x1xf32>
    %c0_7 = arith.constant 0 : index
    %c0_8 = arith.constant 0 : index
    %13 = vector.load %arg4[%c0_7, %c0_8] : memref<2x1xf32, #tpu.memory_space<vmem>>, vector<2x1xf32>
    tpu.vector_store %arg4[%c0_7, %c0_8], %12 {strides = array<i32>} : memref<2x1xf32, #tpu.memory_space<vmem>>, vector<2x1xf32>,
    return
  }
  func.func @transform_0(%arg0: i32) -> (i32, i32) {
    %c0_i32 = arith.constant 0 : i32
    %c0_i32_0 = arith.constant 0 : i32
    return %arg0, %c0_i32 : i32, i32
  }
  func.func @transform_1(%arg0: i32) -> (i32, i32) {
    %c0_i32 = arith.constant 0 : i32
    %c0_i32_0 = arith.constant 0 : i32
    return %arg0, %c0_i32 : i32, i32
  }
  func.func @transform_2(%arg0: i32) -> (i32, i32) {
    %c0_i32 = arith.constant 0 : i32
    %c0_i32_0 = arith.constant 0 : i32
    return %arg0, %c0_i32 : i32, i32
  }
  func.func @transform_3(%arg0: i32) -> (i32, i32) {
    %c0_i32 = arith.constant 0 : i32
    %c0_i32_0 = arith.constant 0 : i32
    return %arg0, %c0_i32 : i32, i32
  }
}

</mosaic_0001>

<llo_original>
// kernel: tpu_custom_call.1
$region0: #{tpu_custom_call.1}
  #allocation0 [shape = 'u32[]', space=smem, size = 0x4, offset = 0x4, fixed_abs, tag = 'smem constant byte address 0x4 - core index']
  #allocation1 [shape = 'u32[144,128]{1,0:T(1,128)}', space=vmem, size = 0x12000, scoped, tag = 'internal scratch']
  %s0 = inlined_call_operand.hbm [shape: f32[2,845], index: 0, kind: input, shape index: {}]
  %s1 = inlined_call_operand.hbm [shape: f32[2,3380], index: 1, kind: input, shape index: {}]
  %s2 = inlined_call_operand.hbm [shape: f32[2,3380], index: 2, kind: input, shape index: {}]
  %s3 = inlined_call_operand.vmem [shape: f32[2,1], index: 3, kind: output, shape index: {}]
  %s4 = sld [smem:[#allocation0]]
  $region34: #{tpu_custom_call.1} parent=0
    _
  %s6 = ssub.s32 1, %s4
  %s7 = scalar_select 0, %s6, %s4
  $region1: #{tpu_custom_call.1} parent=0
    #allocation2 [shape = 'u8[7168]{0}', space=vmem, size = 0x1c00, scoped, tag = 'input window, operand 0, single buffered']
    #allocation3 [shape = 's32[1]{0}', space=sflag, size = 0x4, scoped, tag = 'scoped memory for tpu_custom_call.1']
    #allocation4 [shape = 'u8[27648]{0}', space=vmem, size = 0x6c00, scoped, tag = 'input window, operand 1, single buffered']
    #allocation5 [shape = 's32[1]{0}', space=sflag, size = 0x4, scoped, tag = 'scoped memory for tpu_custom_call.1']
    #allocation6 [shape = 'u8[27648]{0}', space=vmem, size = 0x6c00, scoped, tag = 'input window, operand 2, single buffered']
    %8 = vsyncpa [#allocation3], 0
    %9 = vsyncpa [#allocation5], 0
    // Predicated region
    $region2: #{tpu_custom_call.1} parent=1 // pred_check
      _
    $region3: #{tpu_custom_call.1} parent=1 // pred_check_branch
      %11 = sbr.rel (0) target = $region5
    $region4: #{tpu_custom_call.1} parent=1 // pred_region
      %s13 = ssub.s32 224, 224
      %14 = vsyncadd [#allocation3], %s13
      %s16 = sshll.u32 [#allocation2], 4
      %s17 = int_to_ptr.vmem [resolvable:$true] %s16
      %19 = dma.hbm_to_vmem [thread:$0]  %s0, 224, %s17, [#allocation3]
    $region5: #{tpu_custom_call.1} parent=1 // pred_fallthru
      _
    // Predicated region
    $region6: #{tpu_custom_call.1} parent=1 // pred_check
      _
    $region7: #{tpu_custom_call.1} parent=1 // pred_check_branch
      %21 = sbr.rel (0) target = $region9
    $region8: #{tpu_custom_call.1} parent=1 // pred_region
      %s23 = ssub.s32 864, 864
      %24 = vsyncadd [#allocation5], %s23
      %s26 = sshll.u32 [#allocation4], 4
      %s27 = int_to_ptr.vmem [resolvable:$true] %s26
      %29 = dma.hbm_to_vmem [thread:$0]  %s1, 864, %s27, [#allocation5]
    $region9: #{tpu_custom_call.1} parent=1 // pred_fallthru
      _
    // Predicated region
    $region10: #{tpu_custom_call.1} parent=1 // pred_check
      _
    $region11: #{tpu_custom_call.1} parent=1 // pred_check_branch
      %31 = sbr.rel (0) target = $region13
    $region12: #{tpu_custom_call.1} parent=1 // pred_region
      %s33 = ssub.s32 864, 864
      %34 = vsyncadd [#allocation5], %s33
      %s36 = sshll.u32 [#allocation6], 4
      %s37 = int_to_ptr.vmem [resolvable:$true] %s36
      %39 = dma.hbm_to_vmem [thread:$0]  %s2, 864, %s37, [#allocation5]
    $region13: #{tpu_custom_call.1} parent=1 // pred_fallthru
      _
    // Predicated region
    $region14: #{tpu_custom_call.1} parent=1 // pred_check
      _
    $region15: #{tpu_custom_call.1} parent=1 // pred_check_branch
      %41 = sbr.rel (0) target = $region17
    $region16: #{tpu_custom_call.1} parent=1 // pred_region
      %42 = dma.done [#allocation3], 224
    $region17: #{tpu_custom_call.1} parent=1 // pred_fallthru
      _
    // Predicated region
    $region18: #{tpu_custom_call.1} parent=1 // pred_check
      _
    $region19: #{tpu_custom_call.1} parent=1 // pred_check_branch
      %44 = sbr.rel (0) target = $region21
    $region20: #{tpu_custom_call.1} parent=1 // pred_region
      %45 = dma.done [#allocation5], 864
    $region21: #{tpu_custom_call.1} parent=1 // pred_fallthru
      _
    // Predicated region
    $region22: #{tpu_custom_call.1} parent=1 // pred_check
      _
    $region23: #{tpu_custom_call.1} parent=1 // pred_check_branch
      %47 = sbr.rel (0) target = $region25
    $region24: #{tpu_custom_call.1} parent=1 // pred_region
      %48 = dma.done [#allocation5], 864
    $region25: #{tpu_custom_call.1} parent=1 // pred_fallthru
      _
    %v49 = vld [vmem:[#allocation2] sm:$0xff]
    %v50 = vld [vmem:[#allocation2 + $0x8] sm:$0x3f]
    %v51 = vld [vmem:[#allocation4] sm:$0xff]
    %v52 = vld [vmem:[#allocation4 + $0x8] sm:$0xff]
    %v53 = vld [vmem:[#allocation4 + $0x10] sm:$0xff]
    %v54 = vld [vmem:[#allocation4 + $0x18] sm:$0xff]
    %v55 = vld [vmem:[#allocation4 + $0x20] sm:$0xff]
    %v56 = vld [vmem:[#allocation4 + $0x28] sm:$0xff]
    %v57 = vld [vmem:[#allocation4 + $0x30] sm:$0x3f]
    %v58 = vld [vmem:[#allocation6] sm:$0xff]
    %v59 = vld [vmem:[#allocation6 + $0x8] sm:$0xff]
    %v60 = vld [vmem:[#allocation6 + $0x10] sm:$0xff]
    %v61 = vld [vmem:[#allocation6 + $0x18] sm:$0xff]
    %v62 = vld [vmem:[#allocation6 + $0x20] sm:$0xff]
    %v63 = vld [vmem:[#allocation6 + $0x28] sm:$0xff]
    %v64 = vld [vmem:[#allocation6 + $0x30] sm:$0x3f]
    %v67 = vcombine.high %v49, %v49
    %v69 = vunpack.c.l.s4 1983009808
    %v70 = vunpack.c.0.s8 %v69
    %v71 = vlaneseq
    %v72 = vshrl.u32 %v71, 7
    %v73 = vsub.s32 %v70, %v72
    %v74 = vrot.slane %v49, %v73
    %v76 = vunpack.c.l.s4 1983009808
    %v77 = vunpack.c.0.s8 %v76
    %v78 = vlaneseq
    %v79 = vshrl.u32 %v78, 7
    %v80 = vsub.s32 %v77, %v79
    %v81 = vrot.slane %v67, %v80
    %v82 = vcombine.high %v74, %v74
    %v83 = vcombine.high %v81, %v81
    %v84 = vcombine.high %v50, %v50
    %v86 = vunpack.c.l.s4 1983009808
    %v87 = vunpack.c.0.s8 %v86
    %v88 = vlaneseq
    %v89 = vshrl.u32 %v88, 7
    %v90 = vsub.s32 %v87, %v89
    %v91 = vrot.slane %v50, %v90
    %v93 = vunpack.c.l.s4 1983009808
    %v94 = vunpack.c.0.s8 %v93
    %v95 = vlaneseq
    %v96 = vshrl.u32 %v95, 7
    %v97 = vsub.s32 %v94, %v96
    %v98 = vrot.slane %v84, %v97
    %v99 = vcombine.high %v91, %v91
    %vm107 = vcmask 1041408
    %v108 = vsel %vm107, %v74, 0.0
    %v109 = vsel %vm107, %v82, 0.0
    %v110 = vadd.f32 %v108, %v109
    %v111 = vsel %vm107, %v81, 0.0
    %v112 = vadd.f32 %v110, %v111
    %v113 = vsel %vm107, %v83, 0.0
    %v114 = vadd.f32 %v112, %v113
    %v115 = vsel %vm107, %v91, 0.0
    %v116 = vadd.f32 %v114, %v115
    %v117 = vsel %vm107, %v99, 0.0
    %v118 = vadd.f32 %v116, %v117
    %vm119 = vcmask 623616
    %v120 = vsel %vm119, %v98, 0.0
    %v121 = vadd.f32 %v118, %v120
    %122 = vadd.xlane.f32.xlu0 %v121
    %v123 = vpop.xlane.xlu0 %122
    %v124 = vlog2.pop %v58
    %v125 = vmul.f32 %v124, 0.6931472
    %v126 = vlog2.pop %v59
    %v127 = vmul.f32 %v126, 0.6931472
    %v128 = vlog2.pop %v60
    %v129 = vmul.f32 %v128, 0.6931472
    %v130 = vlog2.pop %v61
    %v131 = vmul.f32 %v130, 0.6931472
    %v132 = vlog2.pop %v62
    %v133 = vmul.f32 %v132, 0.6931472
    %v134 = vlog2.pop %v63
    %v135 = vmul.f32 %v134, 0.6931472
    %v136 = vlog2.pop %v64
    %v137 = vmul.f32 %v136, 0.6931472
    %v138 = vmul.f32 %v51, %v125
    %v139 = vmul.f32 %v52, %v127
    %v140 = vmul.f32 %v53, %v129
    %v141 = vmul.f32 %v54, %v131
    %v142 = vmul.f32 %v55, %v133
    %v143 = vmul.f32 %v56, %v135
    %v144 = vmul.f32 %v57, %v137
    %v152 = vcombine.high %v138, %v138
    %v154 = vunpack.c.l.s4 1983009808
    %v155 = vunpack.c.0.s8 %v154
    %v156 = vlaneseq
    %v157 = vshrl.u32 %v156, 7
    %v158 = vsub.s32 %v155, %v157
    %v159 = vrot.slane %v138, %v158
    %v161 = vunpack.c.l.s4 1983009808
    %v162 = vunpack.c.0.s8 %v161
    %v163 = vlaneseq
    %v164 = vshrl.u32 %v163, 7
    %v165 = vsub.s32 %v162, %v164
    %v166 = vrot.slane %v152, %v165
    %v167 = vcombine.high %v159, %v159
    %v168 = vcombine.high %v166, %v166
    %v169 = vcombine.high %v139, %v139
    %v171 = vunpack.c.l.s4 1983009808
    %v172 = vunpack.c.0.s8 %v171
    %v173 = vlaneseq
    %v174 = vshrl.u32 %v173, 7
    %v175 = vsub.s32 %v172, %v174
    %v176 = vrot.slane %v139, %v175
    %v178 = vunpack.c.l.s4 1983009808
    %v179 = vunpack.c.0.s8 %v178
    %v180 = vlaneseq
    %v181 = vshrl.u32 %v180, 7
    %v182 = vsub.s32 %v179, %v181
    %v183 = vrot.slane %v169, %v182
    %v184 = vcombine.high %v176, %v176
    %v185 = vcombine.high %v183, %v183
    %v186 = vcombine.high %v140, %v140
    %v188 = vunpack.c.l.s4 1983009808
    %v189 = vunpack.c.0.s8 %v188
    %v190 = vlaneseq
    %v191 = vshrl.u32 %v190, 7
    %v192 = vsub.s32 %v189, %v191
    %v193 = vrot.slane %v140, %v192
    %v195 = vunpack.c.l.s4 1983009808
    %v196 = vunpack.c.0.s8 %v195
    %v197 = vlaneseq
    %v198 = vshrl.u32 %v197, 7
    %v199 = vsub.s32 %v196, %v198
    %v200 = vrot.slane %v186, %v199
    %v201 = vcombine.high %v193, %v193
    %v202 = vcombine.high %v200, %v200
    %v203 = vcombine.high %v141, %v141
    %v205 = vunpack.c.l.s4 1983009808
    %v206 = vunpack.c.0.s8 %v205
    %v207 = vlaneseq
    %v208 = vshrl.u32 %v207, 7
    %v209 = vsub.s32 %v206, %v208
    %v210 = vrot.slane %v141, %v209
    %v212 = vunpack.c.l.s4 1983009808
    %v213 = vunpack.c.0.s8 %v212
    %v214 = vlaneseq
    %v215 = vshrl.u32 %v214, 7
    %v216 = vsub.s32 %v213, %v215
    %v217 = vrot.slane %v203, %v216
    %v218 = vcombine.high %v210, %v210
    %v219 = vcombine.high %v217, %v217
    %v220 = vcombine.high %v142, %v142
    %v222 = vunpack.c.l.s4 1983009808
    %v223 = vunpack.c.0.s8 %v222
    %v224 = vlaneseq
    %v225 = vshrl.u32 %v224, 7
    %v226 = vsub.s32 %v223, %v225
    %v227 = vrot.slane %v142, %v226
    %v229 = vunpack.c.l.s4 1983009808
    %v230 = vunpack.c.0.s8 %v229
    %v231 = vlaneseq
    %v232 = vshrl.u32 %v231, 7
    %v233 = vsub.s32 %v230, %v232
    %v234 = vrot.slane %v220, %v233
    %v235 = vcombine.high %v227, %v227
    %v236 = vcombine.high %v234, %v234
    %v237 = vcombine.high %v143, %v143
    %v239 = vunpack.c.l.s4 1983009808
    %v240 = vunpack.c.0.s8 %v239
    %v241 = vlaneseq
    %v242 = vshrl.u32 %v241, 7
    %v243 = vsub.s32 %v240, %v242
    %v244 = vrot.slane %v143, %v243
    %v246 = vunpack.c.l.s4 1983009808
    %v247 = vunpack.c.0.s8 %v246
    %v248 = vlaneseq
    %v249 = vshrl.u32 %v248, 7
    %v250 = vsub.s32 %v247, %v249
    %v251 = vrot.slane %v237, %v250
    %v252 = vcombine.high %v244, %v244
    %v253 = vcombine.high %v251, %v251
    %v254 = vcombine.high %v144, %v144
    %v256 = vunpack.c.l.s4 1983009808
    %v257 = vunpack.c.0.s8 %v256
    %v258 = vlaneseq
    %v259 = vshrl.u32 %v258, 7
    %v260 = vsub.s32 %v257, %v259
    %v261 = vrot.slane %v144, %v260
    %v263 = vunpack.c.l.s4 1983009808
    %v264 = vunpack.c.0.s8 %v263
    %v265 = vlaneseq
    %v266 = vshrl.u32 %v265, 7
    %v267 = vsub.s32 %v264, %v266
    %v268 = vrot.slane %v254, %v267
    %v269 = vcombine.high %v261, %v261
    %v297 = vsel %vm107, %v159, 0.0
    %v298 = vsel %vm107, %v167, 0.0
    %v299 = vadd.f32 %v297, %v298
    %v300 = vsel %vm107, %v166, 0.0
    %v301 = vadd.f32 %v299, %v300
    %v302 = vsel %vm107, %v168, 0.0
    %v303 = vadd.f32 %v301, %v302
    %v304 = vsel %vm107, %v176, 0.0
    %v305 = vadd.f32 %v303, %v304
    %v306 = vsel %vm107, %v184, 0.0
    %v307 = vadd.f32 %v305, %v306
    %v308 = vsel %vm107, %v183, 0.0
    %v309 = vadd.f32 %v307, %v308
    %v310 = vsel %vm107, %v185, 0.0
    %v311 = vadd.f32 %v309, %v310
    %v312 = vsel %vm107, %v193, 0.0
    %v313 = vadd.f32 %v311, %v312
    %v314 = vsel %vm107, %v201, 0.0
    %v315 = vadd.f32 %v313, %v314
    %v316 = vsel %vm107, %v200, 0.0
    %v317 = vadd.f32 %v315, %v316
    %v318 = vsel %vm107, %v202, 0.0
    %v319 = vadd.f32 %v317, %v318
    %v320 = vsel %vm107, %v210, 0.0
    %v321 = vadd.f32 %v319, %v320
    %v322 = vsel %vm107, %v218, 0.0
    %v323 = vadd.f32 %v321, %v322
    %v324 = vsel %vm107, %v217, 0.0
    %v325 = vadd.f32 %v323, %v324
    %v326 = vsel %vm107, %v219, 0.0
    %v327 = vadd.f32 %v325, %v326
    %v328 = vsel %vm107, %v227, 0.0
    %v329 = vadd.f32 %v327, %v328
    %v330 = vsel %vm107, %v235, 0.0
    %v331 = vadd.f32 %v329, %v330
    %v332 = vsel %vm107, %v234, 0.0
    %v333 = vadd.f32 %v331, %v332
    %v334 = vsel %vm107, %v236, 0.0
    %v335 = vadd.f32 %v333, %v334
    %v336 = vsel %vm107, %v244, 0.0
    %v337 = vadd.f32 %v335, %v336
    %v338 = vsel %vm107, %v252, 0.0
    %v339 = vadd.f32 %v337, %v338
    %v340 = vsel %vm107, %v251, 0.0
    %v341 = vadd.f32 %v339, %v340
    %v342 = vsel %vm107, %v253, 0.0
    %v343 = vadd.f32 %v341, %v342
    %v344 = vsel %vm107, %v261, 0.0
    %v345 = vadd.f32 %v343, %v344
    %v346 = vsel %vm107, %v269, 0.0
    %v347 = vadd.f32 %v345, %v346
    %vm348 = vcmask 418816
    %v349 = vsel %vm348, %v268, 0.0
    %v350 = vadd.f32 %v347, %v349
    %351 = vadd.xlane.f32.xlu0 %v350
    %v352 = vpop.xlane.xlu0 %351
    %v353 = vrcp.pop %v123
    %v354 = vmul.f32 %v352, %v353
    %vm355 = vcmask 1024
    %356 = vst.msk [vmem:[%s3] sm:$0x3] %vm355, %v354
    // Predicated region
    $region26: #{tpu_custom_call.1} parent=1 // pred_check
      _
    $region27: #{tpu_custom_call.1} parent=1 // pred_check_branch
      %358 = sbr.rel (0) target = $region29
    $region28: #{tpu_custom_call.1} parent=1 // pred_region
      _
    $region29: #{tpu_custom_call.1} parent=1 // pred_fallthru
      _
    // Predicated region
    $region30: #{tpu_custom_call.1} parent=1 // pred_check
      _
    $region31: #{tpu_custom_call.1} parent=1 // pred_check_branch
      %360 = sbr.rel (0) target = $region33
    $region32: #{tpu_custom_call.1} parent=1 // pred_region
      _
    $region33: #{tpu_custom_call.1} parent=1 // pred_fallthru
      _
    %361 = vsyncpa [#allocation3], 1
    %362 = vsyncpa [#allocation5], 1

</llo_original>
